<compile_context>
chip_gen: v7x
topology: tpu7x:2x2x1
jax: 0.10.0
libtpu: 0.0.40
codegen_flags: <defaults>
</compile_context>

<pallas_src>
import functools
import math

import jax
import jax.numpy as jnp
from jax.experimental import pallas as pl
from jax.experimental.pallas import tpu as pltpu


def _rmsnorm_kernel(x_ref, w_ref, o_ref, *, eps, inv_hidden, match_torch_casts):
    # Upcast once to f32 (like torch's .to(float32)), reduce along lanes,
    # rsqrt on the EUP, scale, single downcast on the way out.
    x = x_ref[...].astype(jnp.float32)
    # Sum-of-squares divided by the *true* hidden size so lane padding of the
    # hidden axis (zeros) does not perturb the mean.
    var = jnp.sum(x * x, axis=-1, keepdims=True) * inv_hidden
    inv = jax.lax.rsqrt(var + eps)
    w = w_ref[...].astype(jnp.float32)
    if match_torch_casts:
        # Bit-exact HF/torch semantics: round the normalized activations to
        # the input dtype before the weight multiply (extra pack/unpack work).
        y = (x * inv).astype(o_ref.dtype).astype(jnp.float32)
        o_ref[...] = (w * y).astype(o_ref.dtype)
    else:
        # Fused cast chain: one downcast total.  Differs from torch only in
        # the last bf16 bit (skips the intermediate bf16 rounding).
        o_ref[...] = (x * inv * w).astype(o_ref.dtype)


def _round_up(n, m):
    return ((n + m - 1) // m) * m


def _tpu_memory_model():
    """(per-core VMEM bytes, #TensorCores) with conservative fallbacks."""
    vmem_bytes = 64 << 20   # conservative default (v7x per-core VMEM)
    num_tc = 1              # conservative default (no forced grid split)
    try:
        info = pltpu.get_tpu_info()
        v = int(getattr(info, "vmem_capacity_bytes", vmem_bytes) or vmem_bytes)
        vmem_bytes = v
        # v7x: 2 TensorCores, 64 MiB VMEM per core.  v5e/v6e: 1 TC, 128 MiB.
        num_tc = 2 if vmem_bytes <= (64 << 20) else 1
    except Exception:
        pass
    return vmem_bytes, num_tc


def _choose_block_rows(rows, hidden_padded, dtype, *, vmem_bytes, num_tc):
    """Largest dtype/sublane-aligned row tile whose full pipelined working set
    (double-buffered in+out in the I/O dtype PLUS the in-kernel f32
    intermediates) fits a chip-aware VMEM budget."""
    itemsize = jnp.dtype(dtype).itemsize
    packing = 8 * max(1, 4 // itemsize)        # 8 f32 / 16 bf16 / 32 int8 rows
    rows_padded = _round_up(rows, packing)

    # Per-row bytes crossing VMEM: 2 double-buffered input blocks +
    # 2 double-buffered output blocks (I/O dtype) + the f32 upcast
    # intermediates (x_f32 live across the reduce, plus x*inv).
    per_row_bytes = 4 * hidden_padded * itemsize + 2 * hidden_padded * 4

    # Byte-based block cap: amortizes the ~0.35us per-step overhead regardless
    # of hidden width, sized to the chip's VMEM.
    working_set_budget = (12 << 20) if vmem_bytes <= (64 << 20) else (24 << 20)

    budget_rows = max(packing, working_set_budget // per_row_bytes)
    block_rows = min(budget_rows, rows_padded)
    block_rows = max(packing, (block_rows // packing) * packing)

    # Multi-TC chips (v7x): keep >= ~3 grid steps per core so each core's
    # double buffering actually overlaps DMA with compute.  Single-TC chips
    # (v5e/v6e): never force a split (pure per-step overhead there).
    if num_tc > 1:
        min_steps = 3 * num_tc
        if rows_padded >= min_steps * packing:
            cap = max(packing, ((rows_padded // min_steps) // packing) * packing)
            block_rows = min(block_rows, cap)
    return block_rows


def rmsnorm(x, weight, eps=1e-6, *, block_rows=None, match_torch_casts=False):
    """RMSNorm over the last axis of x.  weight has shape (hidden,)."""
    orig_shape = x.shape
    hidden = orig_shape[-1]
    rows = int(math.prod(orig_shape[:-1])) if len(orig_shape) > 1 else 1
    x2d = x.reshape(rows, hidden)
    w2d = weight.reshape(1, hidden)

    # Keep the normalized axis lane-dense: pad once in the wrapper to a
    # multiple of 128 so every in-kernel load/store is a full-lane tile
    # (ViT-B/L/H hidden of 768/1024/1280 needs no padding).
    hidden_padded = _round_up(hidden, 128)
    if hidden_padded != hidden:
        pad = hidden_padded - hidden
        x2d = jnp.pad(x2d, ((0, 0), (0, pad)))
        w2d = jnp.pad(w2d, ((0, 0), (0, pad)))

    vmem_bytes, num_tc = _tpu_memory_model()
    if block_rows is None:
        block_rows = _choose_block_rows(rows, hidden_padded, x.dtype,
                                        vmem_bytes=vmem_bytes, num_tc=num_tc)
    # Stay at/below the 32 MiB scoped default on 64 MiB-VMEM parts; use the
    # free headroom on 128 MiB parts.
    vmem_limit = (32 << 20) if vmem_bytes <= (64 << 20) else (64 << 20)

    grid = (pl.cdiv(rows, block_rows),)   # tail block is masked by Pallas

    itemsize = jnp.dtype(x.dtype).itemsize
    cost = pl.CostEstimate(
        flops=int(3 * rows * hidden),
        transcendentals=int(rows),
        bytes_accessed=int(2 * rows * hidden * itemsize
                           + hidden * jnp.dtype(weight.dtype).itemsize),
    )

    kernel = functools.partial(
        _rmsnorm_kernel,
        eps=float(eps),
        inv_hidden=1.0 / float(hidden),
        match_torch_casts=match_torch_casts,
    )

    out = pl.pallas_call(
        kernel,
        out_shape=jax.ShapeDtypeStruct((rows, hidden_padded), x.dtype),
        grid_spec=pltpu.PrefetchScalarGridSpec(
            num_scalar_prefetch=0,
            grid=grid,
            in_specs=[
                # x: lane-dense row tile.  Default 2-deep pipelining; raise to
                # pipeline_mode=pl.Buffered(3) only if a v7x trace still shows
                # exposed DMA after the per-core step-count fix.
                pl.BlockSpec((block_rows, hidden_padded), lambda i: (i, 0)),
                # weight: constant index_map -> stays resident in VMEM.
                pl.BlockSpec((1, hidden_padded), lambda i: (0, 0)),
            ],
            out_specs=pl.BlockSpec((block_rows, hidden_padded), lambda i: (i, 0)),
        ),
        compiler_params=pltpu.CompilerParams(
            dimension_semantics=("parallel",),
            vmem_limit_bytes=vmem_limit,
        ),
        cost_estimate=cost,
    )(x2d, w2d)

    if hidden_padded != hidden:
        out = out[:, :hidden]
    return out.reshape(orig_shape)


def rmsnorm_ref(x, weight, eps=1e-6):
    xf = x.astype(jnp.float32)
    var = jnp.mean(xf * xf, axis=-1, keepdims=True)
    y = (xf * jax.lax.rsqrt(var + eps)).astype(x.dtype)
    return (weight.astype(jnp.float32) * y).astype(x.dtype)


if __name__ == "__main__":
    key = jax.random.PRNGKey(0)

    # f32 path; rows = 2*12 = 24 exercises the cdiv grid / masked-tail path.
    batch, seq, hidden = 2, 12, 128
    kx, kw = jax.random.split(key)
    x = jax.random.normal(kx, (batch, seq, hidden), dtype=jnp.float32)
    # Module initializes the norm weight to ones; perturb slightly so the
    # weight multiply is actually exercised.
    weight = (jnp.ones((hidden,), dtype=jnp.float32)
              + 0.1 * jax.random.normal(kw, (hidden,), dtype=jnp.float32))

    out = jax.block_until_ready(rmsnorm(x, weight, eps=1e-6))
    ref = rmsnorm_ref(x, weight, eps=1e-6)
    assert out.shape == x.shape
    assert jnp.allclose(out, ref, atol=1e-5, rtol=1e-5), "f32 mismatch vs reference"

    # bf16 path (typical ViTDet activation dtype): 16-row sublane packing.
    xb = x.astype(jnp.bfloat16)
    outb = jax.block_until_ready(rmsnorm(xb, weight, eps=1e-6))
    refb = rmsnorm_ref(xb, weight, eps=1e-6)
    assert outb.shape == xb.shape
    assert jnp.allclose(outb.astype(jnp.float32), refb.astype(jnp.float32),
                        atol=2e-2, rtol=2e-2), "bf16 mismatch vs reference"

    # Non-multiple-of-128 hidden exercises the wrapper's lane-padding path
    # (mean is still taken over the true hidden size).
    xq = jax.random.normal(jax.random.PRNGKey(1), (2, 8, 96), dtype=jnp.float32)
    wq = jnp.ones((96,), dtype=jnp.float32)
    outq = jax.block_until_ready(rmsnorm(xq, wq, eps=1e-6))
    refq = rmsnorm_ref(xq, wq, eps=1e-6)
    assert outq.shape == xq.shape
    assert jnp.allclose(outq, refq, atol=1e-5, rtol=1e-5), "padded-hidden mismatch"

    print("KERNEL_OK")
</pallas_src>

<mosaic_0001>
module attributes {stable_mosaic.version = 11 : i64} {
  func.func @_rmsnorm_kernel(%arg0: i32, %arg1: memref<24x128xf32, #tpu.memory_space<vmem>>, %arg2: memref<1x128xf32, #tpu.memory_space<vmem>>, %arg3: memref<24x128xf32, #tpu.memory_space<vmem>>) attributes {dimension_semantics = [#tpu.dimension_semantics<parallel>], iteration_bounds = array<i64: 1>, scalar_prefetch = 0 : i64, scratch_operands = 0 : i64, tpu.core_type = #tpu.core_type<tc>, window_params = [{transform_indices = @transform_0, window_bounds = array<i64: 24, 128>}, {pipeline_mode = #tpu.pipeline_mode<synchronous>, transform_indices = @transform_1, window_bounds = array<i64: 1, 128>}, {transform_indices = @transform_2, window_bounds = array<i64: 24, 128>}]} {
    %c0 = arith.constant 0 : index
    %c0_0 = arith.constant 0 : index
    %0 = vector.load %arg1[%c0, %c0_0] : memref<24x128xf32, #tpu.memory_space<vmem>>, vector<24x128xf32>
    %1 = arith.mulf %0, %0 : vector<24x128xf32>
    %cst = arith.constant dense<0.000000e+00> : vector<24xf32>
    %2 = vector.multi_reduction <add>, %1, %cst [1] : vector<24x128xf32> to vector<24xf32>
    %3 = vector.shape_cast %2 : vector<24xf32> to vector<24x1xf32>
    %cst_1 = arith.constant 7.812500e-03 : f32
    %4 = vector.broadcast %cst_1 : f32 to vector<24x1xf32>
    %5 = arith.mulf %3, %4 : vector<24x1xf32>
    %cst_2 = arith.constant 9.99999997E-7 : f32
    %6 = vector.broadcast %cst_2 : f32 to vector<24x1xf32>
    %7 = arith.addf %5, %6 : vector<24x1xf32>
    %8 = math.rsqrt %7 : vector<24x1xf32>
    %c0_3 = arith.constant 0 : index
    %c0_4 = arith.constant 0 : index
    %9 = vector.load %arg2[%c0_3, %c0_4] : memref<1x128xf32, #tpu.memory_space<vmem>>, vector<1x128xf32>
    %10 = vector.broadcast %8 : vector<24x1xf32> to vector<24x128xf32>
    %11 = arith.mulf %0, %10 : vector<24x128xf32>
    %12 = vector.broadcast %9 : vector<1x128xf32> to vector<24x128xf32>
    %13 = arith.mulf %11, %12 : vector<24x128xf32>
    %c0_5 = arith.constant 0 : index
    %c0_6 = arith.constant 0 : index
    %14 = vector.load %arg3[%c0_5, %c0_6] : memref<24x128xf32, #tpu.memory_space<vmem>>, vector<24x128xf32>
    tpu.vector_store %arg3[%c0_5, %c0_6], %13 {strides = array<i32>} : memref<24x128xf32, #tpu.memory_space<vmem>>, vector<24x128xf32>,
    return
  }
  func.func @transform_0(%arg0: i32) -> (i32, i32) {
    %c0_i32 = arith.constant 0 : i32
    %c0_i32_0 = arith.constant 0 : i32
    return %arg0, %c0_i32 : i32, i32
  }
  func.func @transform_1(%arg0: i32) -> (i32, i32) {
    %c0_i32 = arith.constant 0 : i32
    %c0_i32_0 = arith.constant 0 : i32
    %c0_i32_1 = arith.constant 0 : i32
    return %c0_i32, %c0_i32_0 : i32, i32
  }
  func.func @transform_2(%arg0: i32) -> (i32, i32) {
    %c0_i32 = arith.constant 0 : i32
    %c0_i32_0 = arith.constant 0 : i32
    return %arg0, %c0_i32 : i32, i32
  }
}

</mosaic_0001>

<llo_original>
// kernel: tpu_custom_call.1
$region0: #{tpu_custom_call.1}
  #allocation0 [shape = 'u32[]', space=smem, size = 0x4, offset = 0x4, fixed_abs, tag = 'smem constant byte address 0x4 - core index']
  #allocation1 [shape = 'u32[144,128]{1,0:T(1,128)}', space=vmem, size = 0x12000, scoped, tag = 'internal scratch']
  %s0 = inlined_call_operand.hbm [shape: f32[24,128], index: 0, kind: input, shape index: {}]
  %s1 = inlined_call_operand.vmem [shape: f32[1,128], index: 1, kind: input, shape index: {}]
  %s2 = inlined_call_operand.hbm [shape: f32[24,128], index: 2, kind: output, shape index: {}]
  %s3 = sld [smem:[#allocation0]]
  $region22: #{tpu_custom_call.1} parent=0
    _
  %s5 = ssub.s32 1, %s3
  %s6 = scalar_select 0, %s5, %s3
  $region1: #{tpu_custom_call.1} parent=0
    #allocation2 [shape = 'u8[12288]{0}', space=vmem, size = 0x3000, scoped, tag = 'input window, operand 0, single buffered']
    #allocation3 [shape = 's32[1]{0}', space=sflag, size = 0x4, scoped, tag = 'scoped memory for tpu_custom_call.1']
    #allocation4 [shape = 's32[1]{0}', space=sflag, size = 0x4, scoped, tag = 'scoped memory for tpu_custom_call.1']
    #allocation5 [shape = 'u8[12288]{0}', space=vmem, size = 0x3000, scoped, tag = 'output window, operand 0, single buffered']
    %7 = vsyncpa [#allocation3], 0
    %8 = vsyncpa [#allocation4], 0
    // Predicated region
    $region2: #{tpu_custom_call.1} parent=1 // pred_check
      _
    $region3: #{tpu_custom_call.1} parent=1 // pred_check_branch
      %10 = sbr.rel (0) target = $region5
    $region4: #{tpu_custom_call.1} parent=1 // pred_region
      %s12 = ssub.s32 384, 384
      %13 = vsyncadd [#allocation3], %s12
      %s14 = sshll.u32 [#allocation2], 4
      %s15 = int_to_ptr.vmem [resolvable:$true] %s14
      %20 = dma.hbm_to_vmem [thread:$0]  %s0, 384, %s15, [#allocation3], 128, 128, 8
    $region5: #{tpu_custom_call.1} parent=1 // pred_fallthru
      _
    // Predicated region
    $region6: #{tpu_custom_call.1} parent=1 // pred_check
      _
    $region7: #{tpu_custom_call.1} parent=1 // pred_check_branch
      %22 = sbr.rel (0) target = $region9
    $region8: #{tpu_custom_call.1} parent=1 // pred_region
      _
    $region9: #{tpu_custom_call.1} parent=1 // pred_fallthru
      _
    // Predicated region
    $region10: #{tpu_custom_call.1} parent=1 // pred_check
      _
    $region11: #{tpu_custom_call.1} parent=1 // pred_check_branch
      %24 = sbr.rel (0) target = $region13
    $region12: #{tpu_custom_call.1} parent=1 // pred_region
      %25 = dma.done [#allocation3], 384
    $region13: #{tpu_custom_call.1} parent=1 // pred_fallthru
      _
    %v26 = vld [vmem:[#allocation2] sm:$0xff]
    %v27 = vld [vmem:[#allocation2 + $0x8] sm:$0xff]
    %v28 = vld [vmem:[#allocation2 + $0x10] sm:$0xff]
    %v29 = vmul.f32 %v26, %v26
    %v30 = vmul.f32 %v27, %v27
    %v31 = vmul.f32 %v28, %v28
    %32 = vadd.xlane.f32.xlu0 %v29
    %v33 = vpop.xlane.xlu0 %32
    %34 = vadd.xlane.f32.xlu0 %v30
    %v35 = vpop.xlane.xlu0 %34
    %36 = vadd.xlane.f32.xlu0 %v31
    %v37 = vpop.xlane.xlu0 %36
    %v38 = vmul.f32 %v33, 0.0078125
    %v39 = vmul.f32 %v35, 0.0078125
    %v40 = vmul.f32 %v37, 0.0078125
    %v41 = vadd.f32 %v38, 1e-06
    %v42 = vadd.f32 %v39, 1e-06
    %v43 = vadd.f32 %v40, 1e-06
    %v44 = vrsqrt.pop %v41
    %v45 = vrsqrt.pop %v42
    %v46 = vrsqrt.pop %v43
    %v47 = vld [vmem:[%s1] sm:$0x1]
    %v48 = vmul.f32 %v26, %v44
    %v49 = vmul.f32 %v27, %v45
    %v50 = vmul.f32 %v28, %v46
    %v52 = vlaneseq
    %v53 = vshrl.u32 %v52, 7
    %v54 = vsub.s32 0, %v53
    %v55 = vrot.slane %v47, %v54
    %v57 = vmul.f32 %v48, %v55
    %v58 = vmul.f32 %v49, %v55
    %v59 = vmul.f32 %v50, %v55
    %60 = vst [vmem:[#allocation5] sm:$0xff] %v57
    %61 = vst [vmem:[#allocation5 + $0x8] sm:$0xff] %v58
    %62 = vst [vmem:[#allocation5 + $0x10] sm:$0xff] %v59
    // Predicated region
    $region14: #{tpu_custom_call.1} parent=1 // pred_check
      _
    $region15: #{tpu_custom_call.1} parent=1 // pred_check_branch
      %64 = sbr.rel (0) target = $region17
    $region16: #{tpu_custom_call.1} parent=1 // pred_region
      %s66 = ssub.s32 384, 384
      %67 = vsyncadd [#allocation4], %s66
      %s68 = sshll.u32 [#allocation5], 4
      %s69 = int_to_ptr.vmem [resolvable:$true] %s68
      %74 = dma.vmem_to_hbm [thread:$0]  %s69, 384, %s2, [#allocation4], 128, 128, 8
    $region17: #{tpu_custom_call.1} parent=1 // pred_fallthru
      _
    // Predicated region
    $region18: #{tpu_custom_call.1} parent=1 // pred_check
      _
    $region19: #{tpu_custom_call.1} parent=1 // pred_check_branch
      %76 = sbr.rel (0) target = $region21
    $region20: #{tpu_custom_call.1} parent=1 // pred_region
      %77 = dma.done [#allocation4], 384
    $region21: #{tpu_custom_call.1} parent=1 // pred_fallthru
      _
    %78 = vsyncpa [#allocation3], 1
    %79 = vsyncpa [#allocation4], 1

</llo_original>
